<compile_context>
chip_gen: v6e
topology: v6e:2x2x1
jax: 0.10.0
libtpu: 0.0.40
codegen_flags: <defaults>
</compile_context>

<pallas_src>
import functools

import jax
import jax.numpy as jnp
from jax import lax
from jax.experimental import pallas as pl
from jax.experimental.pallas import tpu as pltpu


# ----------------------------- Pallas kernel --------------------------------

def self_attention_kernel(xf_ref, xres_ref, w_ref, gamma_ref, o_ref, qv_ref,
                          *, qkp, tj):
    """One (batch b, column-tile j) grid cell.

    xf_ref   : (1, C+1, N)   bf16  x with a ones-row appended (bias lane), full N
    xres_ref : (1, C, TJ)    f32   j-tile of the original x (exact residual path)
    w_ref    : (CP, C+1)     bf16  packed [Wq|bq ; 0 ; Wv|bv ; Wk|bk ; 0] rows,
                                   bias in the last column, CP = 2*qkp + C
    gamma    : (1, 1)        f32   SMEM scalar
    o_ref    : (1, C, TJ)          output tile (lane-dense, TJ multiple of 128)
    qv_ref   : (qkp + C, N)  bf16  VMEM scratch: cached fused Q+V projection,
                                   computed once per batch (at j == 0).
    """
    C = o_ref.shape[1]
    j = pl.program_id(1)

    w = w_ref[...]                                   # (CP, C+1) bf16

    # Fused Q+V projection over full N -- computed only once per batch and
    # cached (bf16) in VMEM scratch for all subsequent j-tiles.
    @pl.when(j == 0)
    def _():
        qv_ref[...] = jnp.dot(
            w[:qkp + C, :], xf_ref[0],
            preferred_element_type=jnp.float32).astype(jnp.bfloat16)

    # j-tile of the augmented x, sliced from the resident full-N block
    # (no second DMA stream).  col is a multiple of 128 by construction.
    col = pl.multiple_of(j * tj, 128)
    xt_bf = xf_ref[0, :, pl.ds(col, tj)]             # (C+1, TJ) bf16

    # K projection over the j-tile only (bias folded via the ones-row).
    kt = jnp.dot(w[qkp + C:, :], xt_bf,
                 preferred_element_type=jnp.float32)  # (qkp, TJ) f32

    q = qv_ref[:qkp, :]                              # (qkp, N) bf16, pad rows == 0
    v = qv_ref[qkp:, :]                              # (C, N)   bf16
    k = kt.astype(jnp.bfloat16)                      # (qkp, TJ)

    # scores[i, j] = sum_d q[d, i] * k[d, j]  -- contraction on dim 0 of both,
    # no explicit transpose materialized.  Zero pad rows contribute exactly 0.
    scores = lax.dot_general(q, k,
                             dimension_numbers=(((0,), (0,)), ((), ())),
                             preferred_element_type=jnp.float32)      # (N, TJ)

    # softmax over axis 0 (the query index i) -- kept in f32.
    m = jnp.max(scores, axis=0, keepdims=True)       # (1, TJ)
    e = jnp.exp(scores - m)                          # (N, TJ) f32
    s = jnp.sum(e, axis=0, keepdims=True)            # (1, TJ)

    # out[c, j] = sum_i v[c, i] * attn[i, j];  1/s folded into the small epilogue.
    out_un = jnp.dot(v, e.astype(jnp.bfloat16),
                     preferred_element_type=jnp.float32)              # (C, TJ)
    inv = pl.reciprocal(s, approx=True)              # EUP reciprocal, (1, TJ)

    gamma = gamma_ref[0, 0]
    x_res = xres_ref[0]                              # residual columns, f32 exact
    o_ref[0] = (gamma * (out_un * inv) + x_res).astype(o_ref.dtype)


# ------------------------------ wrapper --------------------------------------

def _pack_qkv_weights(wq, bq, wk, bk, wv, bv, qkp):
    """Pack [Wq|bq ; zeros ; Wv|bv ; Wk|bk ; zeros] into one (CP, C+1) bf16 array."""
    c8, c = wq.shape
    cp = 2 * qkp + c
    W = jnp.zeros((cp, c + 1), jnp.float32)
    W = W.at[:c8, :c].set(wq).at[:c8, c].set(bq)                         # q rows
    W = W.at[qkp:qkp + c, :c].set(wv).at[qkp:qkp + c, c].set(bv)         # v rows
    W = W.at[qkp + c:qkp + c + c8, :c].set(wk)
    W = W.at[qkp + c:qkp + c + c8, c].set(bk)                            # k rows
    return W.astype(jnp.bfloat16)


def self_attention(x_bchw, params, *, tile_j=256, vmem_limit_bytes=None):
    wq, bq, wk, bk, wv, bv, gamma = params
    B, C, H, W_sp = x_bchw.shape
    N = H * W_sp
    C8 = wq.shape[0]

    # q/k row-block padding, sublane-aligned for bf16 (multiple of 16).
    QKP = ((C8 + 15) // 16) * 16
    CP = 2 * QKP + C

    TJ = min(tile_j, N)
    assert N % TJ == 0 and (TJ == N or TJ % 128 == 0), "bad key/output tile size"
    NJ = N // TJ

    x_flat = x_bchw.reshape(B, C, N).astype(jnp.float32)      # f32 residual stream
    ones = jnp.ones((B, 1, N), jnp.float32)
    x_aug_bf = jnp.concatenate([x_flat, ones], axis=1).astype(jnp.bfloat16)  # (B, C+1, N) bf16
    w_packed = _pack_qkv_weights(wq, bq, wk, bk, wv, bv, QKP)  # (CP, C+1) bf16
    gamma_arr = jnp.reshape(gamma, (1, 1)).astype(jnp.float32)

    # Advisory cost estimate for XLA scheduling (projection counted once per batch).
    flops = int(B * 2 * (QKP + C) * (C + 1) * N                # fused q/v projection
                + B * NJ * (2 * QKP * (C + 1) * TJ             # k projection (tile)
                            + 2 * QKP * N * TJ                 # q^T k
                            + 2 * C * N * TJ))                 # v @ attn
    transcendentals = int(B * N * N)                           # exp
    bytes_accessed = int(x_aug_bf.size * 2                     # bf16 x read once/batch
                         + x_flat.size * 4                     # f32 residual tiles
                         + w_packed.size * 2
                         + B * C * N * 4)                      # output

    # Explicit VMEM budget derived from the real per-step footprint.
    if vmem_limit_bytes is None:
        est = (2 * (C + 1) * N * 2          # full-N bf16 x block (double-buffered)
               + 2 * C * TJ * 4             # residual tile
               + 2 * CP * (C + 1) * 2       # packed weights
               + 2 * C * TJ * 4             # output tile
               + (QKP + C) * N * 2          # qv scratch
               + 10 * N * TJ                # scores f32 + e f32 + e bf16
               + QKP * TJ * 4)              # k tile
        # Cap at 64 MiB so the request is safe on v7x; raise tile_j /
        # vmem_limit_bytes explicitly on v5e/v6e (128 MiB VMEM) for large N.
        vmem_limit_bytes = min(max(int(est * 1.5), 32 * 1024 * 1024),
                               64 * 1024 * 1024)

    kernel = functools.partial(self_attention_kernel, qkp=QKP, tj=TJ)

    out = pl.pallas_call(
        kernel,
        out_shape=jax.ShapeDtypeStruct((B, C, N), x_flat.dtype),
        grid_spec=pltpu.PrefetchScalarGridSpec(
            num_scalar_prefetch=0,
            grid=(B, NJ),
            in_specs=[
                pl.BlockSpec((1, C + 1, N), lambda b, j: (b, 0, 0)),    # bf16 x, full N
                pl.BlockSpec((1, C, TJ), lambda b, j: (b, 0, j)),       # f32 residual tile
                pl.BlockSpec((CP, C + 1), lambda b, j: (0, 0)),         # packed W | bias
                pl.BlockSpec(memory_space=pltpu.MemorySpace.SMEM),      # gamma scalar
            ],
            out_specs=pl.BlockSpec((1, C, TJ), lambda b, j: (b, 0, j)),
            scratch_shapes=[pltpu.VMEM((QKP + C, N), jnp.bfloat16)],    # cached qv
        ),
        compiler_params=pltpu.CompilerParams(
            # j must be "arbitrary" (sequential) so the qv cache is valid;
            # B stays "parallel" for v7x megacore sharding.
            dimension_semantics=("parallel", "arbitrary"),
            vmem_limit_bytes=vmem_limit_bytes),
        cost_estimate=pl.CostEstimate(flops=flops,
                                      transcendentals=transcendentals,
                                      bytes_accessed=bytes_accessed),
    )(x_aug_bf, x_flat, w_packed, gamma_arr)

    return out.reshape(B, C, H, W_sp)


# --------------------- parameter init (deterministic) ------------------------

def _xavier_uniform(key, out_ch, in_ch, gain):
    bound = gain * (6.0 / (in_ch + out_ch)) ** 0.5
    return jax.random.uniform(key, (out_ch, in_ch), jnp.float32, -bound, bound)


def _conv_bias(key, out_ch, in_ch):
    # PyTorch Conv1d default bias init: U(-1/sqrt(fan_in), 1/sqrt(fan_in))
    bound = 1.0 / (in_ch ** 0.5)
    return jax.random.uniform(key, (out_ch,), jnp.float32, -bound, bound)


def _spectral_normalize(w, u):
    # One power-iteration step, exactly as SpectralNorm.compute_weight does.
    v = w.T @ u
    v = v / jnp.linalg.norm(v)
    u_new = w @ v
    u_new = u_new / jnp.linalg.norm(u_new)
    sigma = u_new @ w @ v
    return w / sigma


def init_self_attention_params(key, in_channel, gain=2 ** 0.5):
    c8 = in_channel // 8
    ks = jax.random.split(key, 7)
    wq = _xavier_uniform(ks[0], c8, in_channel, gain)
    wk = _xavier_uniform(ks[1], c8, in_channel, gain)
    wv = _xavier_uniform(ks[2], in_channel, in_channel, gain)
    wq = _spectral_normalize(wq, jax.random.normal(ks[3], (c8,)))
    wk = _spectral_normalize(wk, jax.random.normal(ks[4], (c8,)))
    wv = _spectral_normalize(wv, jax.random.normal(ks[5], (in_channel,)))
    bkeys = jax.random.split(ks[6], 3)
    bq = _conv_bias(bkeys[0], c8, in_channel)
    bk = _conv_bias(bkeys[1], c8, in_channel)
    bv = _conv_bias(bkeys[2], in_channel, in_channel)
    gamma = jnp.float32(0.0)   # module init: nn.Parameter(torch.tensor(0.0))
    return (wq, bq, wk, bk, wv, bv, gamma)


# ---------------------------- pure-JAX reference ------------------------------

def self_attention_ref(x_bchw, params):
    wq, bq, wk, bk, wv, bv, gamma = params
    B, C, H, W = x_bchw.shape
    x = x_bchw.reshape(B, C, H * W)
    q = jnp.einsum('oc,bcn->bon', wq, x) + bq[None, :, None]
    k = jnp.einsum('oc,bcn->bon', wk, x) + bk[None, :, None]
    v = jnp.einsum('oc,bcn->bon', wv, x) + bv[None, :, None]
    qk = jnp.einsum('bdi,bdj->bij', q, k)          # (B, N, N)
    attn = jax.nn.softmax(qk, axis=1)              # softmax over dim 1
    out = jnp.einsum('bci,bij->bcj', v, attn)      # (B, C, N)
    return (gamma * out + x).reshape(B, C, H, W)


# --------------------------------- main ---------------------------------------

if __name__ == "__main__":
    key = jax.random.PRNGKey(0)
    k_x, k_p = jax.random.split(key)

    B, C, H, W = 2, 32, 16, 16
    x = jax.random.normal(k_x, (B, C, H, W), jnp.float32)
    params = init_self_attention_params(k_p, C)

    # faithful module-init run (gamma = 0.0): residual path is exact f32
    out = jax.block_until_ready(self_attention(x, params))
    ref = self_attention_ref(x, params)
    ok0 = bool(jnp.allclose(out, ref, atol=1e-5, rtol=1e-5))

    # exercise the attention path with a non-zero gamma too
    # (looser tolerance: kernel matmuls run in bf16 with f32 accumulation and
    #  the softmax denom uses an approximate EUP reciprocal; reference is pure f32)
    params_nz = params[:-1] + (jnp.float32(0.5),)
    out_nz = jax.block_until_ready(self_attention(x, params_nz))
    ref_nz = self_attention_ref(x, params_nz)
    ok1 = bool(jnp.allclose(out_nz, ref_nz, atol=2e-2, rtol=2e-2))

    if ok0 and ok1:
        print("KERNEL_OK")
    else:
        print("MISMATCH",
              float(jnp.max(jnp.abs(out - ref))),
              float(jnp.max(jnp.abs(out_nz - ref_nz))))
</pallas_src>

<mosaic_0001>
module attributes {stable_mosaic.version = 11 : i64} {
  func.func @self_attention_kernel(%arg0: i32, %arg1: i32, %arg2: memref<1x33x256xbf16, #tpu.memory_space<vmem>>, %arg3: memref<1x32x256xf32, #tpu.memory_space<vmem>>, %arg4: memref<64x33xbf16, #tpu.memory_space<vmem>>, %arg5: memref<1x1xf32, #tpu.memory_space<smem>>, %arg6: memref<1x32x256xf32, #tpu.memory_space<vmem>>, %arg7: memref<48x256xbf16, #tpu.memory_space<vmem>>) attributes {dimension_semantics = [#tpu.dimension_semantics<parallel>, #tpu.dimension_semantics<arbitrary>], iteration_bounds = array<i64: 2, 1>, scalar_prefetch = 0 : i64, scratch_operands = 1 : i64, tpu.core_type = #tpu.core_type<tc>, window_params = [{transform_indices = @transform_0, window_bounds = array<i64: 1, 33, 256>}, {transform_indices = @transform_1, window_bounds = array<i64: 1, 32, 256>}, {pipeline_mode = #tpu.pipeline_mode<synchronous>, transform_indices = @transform_2, window_bounds = array<i64: 64, 33>}, {transform_indices = @transform_3, window_bounds = array<i64: 1, 1>}, {transform_indices = @transform_4, window_bounds = array<i64: 1, 32, 256>}]} {
    %c0 = arith.constant 0 : index
    %c0_0 = arith.constant 0 : index
    %0 = vector.load %arg4[%c0, %c0_0] : memref<64x33xbf16, #tpu.memory_space<vmem>>, vector<64x33xbf16>
    %c0_i32 = arith.constant 0 : i32
    %1 = arith.cmpi eq, %arg1, %c0_i32 : i32
    %2 = arith.extui %1 : i1 to i32
    %c0_i32_1 = arith.constant 0 : i32
    %3 = arith.cmpi ne, %2, %c0_i32_1 : i32
    scf.if %3 {
      %36 = vector.extract_strided_slice %0 {offsets = [0, 0], sizes = [48, 33], strides = [1, 1]} : vector<64x33xbf16> to vector<48x33xbf16>
      %c0_19 = arith.constant 0 : index
      %c0_20 = arith.constant 0 : index
      %c0_21 = arith.constant 0 : index
      %37 = vector.load %arg2[%c0_19, %c0_20, %c0_21] : memref<1x33x256xbf16, #tpu.memory_space<vmem>>, vector<1x33x256xbf16>
      %38 = vector.shape_cast %37 : vector<1x33x256xbf16> to vector<33x256xbf16>
      %cst_22 = arith.constant dense<0.000000e+00> : vector<48x256xf32>
      %39 = tpu.matmul %36, %38, %cst_22 {dimension_numbers = #tpu.dot_dimension_numbers<[1], [0], [0], [1], [0, 0, 1, 1], [], []>} : vector<48x33xbf16>, vector<33x256xbf16>, vector<48x256xf32> -> vector<48x256xf32>
      %40 = arith.truncf %39 : vector<48x256xf32> to vector<48x256xbf16>
      %c0_23 = arith.constant 0 : index
      %c0_24 = arith.constant 0 : index
      %41 = vector.load %arg7[%c0_23, %c0_24] : memref<48x256xbf16, #tpu.memory_space<vmem>>, vector<48x256xbf16>
      tpu.vector_store %arg7[%c0_23, %c0_24], %40 {strides = array<i32>} : memref<48x256xbf16, #tpu.memory_space<vmem>>, vector<48x256xbf16>,
    } else {
    }
    %c256_i32 = arith.constant 256 : i32
    %4 = arith.muli %arg1, %c256_i32 : i32
    %5 = tpu.assume_multiple %4, 128 : i32
    %c0_2 = arith.constant 0 : index
    %c0_3 = arith.constant 0 : index
    %6 = arith.index_cast %5 : i32 to index
    %7 = vector.load %arg2[%c0_2, %c0_3, %6] : memref<1x33x256xbf16, #tpu.memory_space<vmem>>, vector<1x33x256xbf16>
    %8 = vector.shape_cast %7 : vector<1x33x256xbf16> to vector<33x256xbf16>
    %9 = vector.extract_strided_slice %0 {offsets = [48, 0], sizes = [16, 33], strides = [1, 1]} : vector<64x33xbf16> to vector<16x33xbf16>
    %cst = arith.constant dense<0.000000e+00> : vector<16x256xf32>
    %10 = tpu.matmul %9, %8, %cst {dimension_numbers = #tpu.dot_dimension_numbers<[1], [0], [0], [1], [0, 0, 1, 1], [], []>} : vector<16x33xbf16>, vector<33x256xbf16>, vector<16x256xf32> -> vector<16x256xf32>
    %c0_4 = arith.constant 0 : index
    %c0_5 = arith.constant 0 : index
    %11 = vector.load %arg7[%c0_4, %c0_5] : memref<48x256xbf16, #tpu.memory_space<vmem>>, vector<16x256xbf16>
    %c16 = arith.constant 16 : index
    %c0_6 = arith.constant 0 : index
    %12 = vector.load %arg7[%c16, %c0_6] : memref<48x256xbf16, #tpu.memory_space<vmem>>, vector<32x256xbf16>
    %13 = arith.truncf %10 : vector<16x256xf32> to vector<16x256xbf16>
    %cst_7 = arith.constant dense<0.000000e+00> : vector<256x256xf32>
    %14 = tpu.matmul %11, %13, %cst_7 {dimension_numbers = #tpu.dot_dimension_numbers<[0], [0], [1], [1], [0, 1, 1, 1], [], []>} : vector<16x256xbf16>, vector<16x256xbf16>, vector<256x256xf32> -> vector<256x256xf32>
    %cst_8 = arith.constant dense<0xFF800000> : vector<256xf32>
    %15 = vector.multi_reduction <maximumf>, %14, %cst_8 [0] : vector<256x256xf32> to vector<256xf32>
    %16 = vector.shape_cast %15 : vector<256xf32> to vector<1x256xf32>
    %17 = vector.broadcast %16 : vector<1x256xf32> to vector<256x256xf32>
    %18 = arith.subf %14, %17 : vector<256x256xf32>
    %19 = math.exp %18 : vector<256x256xf32>
    %cst_9 = arith.constant dense<0.000000e+00> : vector<256xf32>
    %20 = vector.multi_reduction <add>, %19, %cst_9 [0] : vector<256x256xf32> to vector<256xf32>
    %21 = vector.shape_cast %20 : vector<256xf32> to vector<1x256xf32>
    %22 = arith.truncf %19 : vector<256x256xf32> to vector<256x256xbf16>
    %cst_10 = arith.constant dense<0.000000e+00> : vector<32x256xf32>
    %23 = tpu.matmul %12, %22, %cst_10 {dimension_numbers = #tpu.dot_dimension_numbers<[1], [0], [0], [1], [0, 0, 1, 1], [], []>} : vector<32x256xbf16>, vector<256x256xbf16>, vector<32x256xf32> -> vector<32x256xf32>
    %24 = tpu.reciprocal %21 {approx = true} : vector<1x256xf32> -> vector<1x256xf32>
    %c0_11 = arith.constant 0 : index
    %c0_12 = arith.constant 0 : index
    %25 = memref.load %arg5[%c0_11, %c0_12] : memref<1x1xf32, #tpu.memory_space<smem>>
    %c0_13 = arith.constant 0 : index
    %c0_14 = arith.constant 0 : index
    %c0_15 = arith.constant 0 : index
    %26 = vector.load %arg3[%c0_13, %c0_14, %c0_15] : memref<1x32x256xf32, #tpu.memory_space<vmem>>, vector<1x32x256xf32>
    %27 = vector.shape_cast %26 : vector<1x32x256xf32> to vector<32x256xf32>
    %28 = vector.broadcast %24 : vector<1x256xf32> to vector<32x256xf32>
    %29 = arith.mulf %23, %28 : vector<32x256xf32>
    %30 = vector.broadcast %25 : f32 to vector<32x256xf32>
    %31 = arith.mulf %30, %29 : vector<32x256xf32>
    %32 = arith.addf %31, %27 : vector<32x256xf32>
    %c0_16 = arith.constant 0 : index
    %c0_17 = arith.constant 0 : index
    %c0_18 = arith.constant 0 : index
    %33 = vector.load %arg6[%c0_16, %c0_17, %c0_18] : memref<1x32x256xf32, #tpu.memory_space<vmem>>, vector<1x32x256xf32>
    %34 = vector.shape_cast %33 : vector<1x32x256xf32> to vector<32x256xf32>
    %35 = vector.shape_cast %32 : vector<32x256xf32> to vector<1x32x256xf32>
    tpu.vector_store %arg6[%c0_16, %c0_17, %c0_18], %35 {strides = array<i32>} : memref<1x32x256xf32, #tpu.memory_space<vmem>>, vector<1x32x256xf32>,
    return
  }
  func.func @transform_0(%arg0: i32, %arg1: i32) -> (i32, i32, i32) {
    %c0_i32 = arith.constant 0 : i32
    %c0_i32_0 = arith.constant 0 : i32
    %c0_i32_1 = arith.constant 0 : i32
    return %arg0, %c0_i32, %c0_i32_0 : i32, i32, i32
  }
  func.func @transform_1(%arg0: i32, %arg1: i32) -> (i32, i32, i32) {
    %c0_i32 = arith.constant 0 : i32
    %c0_i32_0 = arith.constant 0 : i32
    return %arg0, %c0_i32, %arg1 : i32, i32, i32
  }
  func.func @transform_2(%arg0: i32, %arg1: i32) -> (i32, i32) {
    %c0_i32 = arith.constant 0 : i32
    %c0_i32_0 = arith.constant 0 : i32
    %c0_i32_1 = arith.constant 0 : i32
    return %c0_i32, %c0_i32_0 : i32, i32
  }
  func.func @transform_3(%arg0: i32, %arg1: i32) -> (i32, i32) {
    %c0_i32 = arith.constant 0 : i32
    %c0_i32_0 = arith.constant 0 : i32
    %c0_i32_1 = arith.constant 0 : i32
    return %c0_i32, %c0_i32_0 : i32, i32
  }
  func.func @transform_4(%arg0: i32, %arg1: i32) -> (i32, i32, i32) {
    %c0_i32 = arith.constant 0 : i32
    %c0_i32_0 = arith.constant 0 : i32
    return %arg0, %c0_i32, %arg1 : i32, i32, i32
  }
}

</mosaic_0001>

<llo_original>
// kernel: tpu_custom_call.1
$region0: #{tpu_custom_call.1}
  #allocation0 [shape = 'u32[]', space=smem, size = 0x4, offset = 0x4, fixed_abs, tag = 'smem constant byte address 0x4 - core index']
  #allocation1 [shape = 'u32[144,128]{1,0:T(1,128)}', space=vmem, size = 0x12000, scoped, tag = 'internal scratch']
  #allocation2 [shape = 'bf16[48,256]{1,0:T(8,128)(2,1)}', space=vmem, size = 0x6000, scoped, tag = 'scratch operand']
  #allocation3 [shape = 'f32[1,1]{1,0:T(1,128)S(6)}', space=smem, size = 0x200, scoped, tag = 'scoped memory for tpu_custom_call.1']
  %s0 = inlined_call_operand.vmem [shape: bf16[2,33,256], index: 0, kind: input, shape index: {}]
  %s1 = inlined_call_operand.vmem [shape: f32[2,32,256], index: 1, kind: input, shape index: {}]
  %s2 = inlined_call_operand.vmem [shape: bf16[64,33], index: 2, kind: input, shape index: {}]
  %s3 = inlined_call_operand.<no memory space> [shape: f32[1,1], index: 3, kind: input, shape index: {}]
  %s4 = inlined_call_operand.hbm [shape: f32[2,32,256], index: 4, kind: output, shape index: {}]
  %s5 = sld [smem:[#allocation0]]
  $region53: #{tpu_custom_call.1} parent=0
    _
  %s7 = ssub.s32 1, %s5
  %s8 = scalar_select 0, %s7, %s5
  %9 = sst [smem:[#allocation3]] %s3
  $region1: #{tpu_custom_call.1} parent=0
    #allocation4 [shape = 'u8[65536]{0}', space=vmem, size = 0x10000, scoped, tag = 'output window, operand 0']
    #allocation5 [shape = 's32[2]{0}', space=sflag, size = 0x8, scoped, tag = 'scoped memory for tpu_custom_call.1']
    %10 = vsyncpa [#allocation5], 0
    %s11 = scalar_lea.sflag [#allocation5], 1
    %12 = vsyncpa %s11, 0
    loop: start=0, step=1, limit=4
    $region2: #{tpu_custom_call.1} parent=1 // loop_pre_header
      _
    $region3: #{tpu_custom_call.1} parent=1 // loop_header
      %s14 = sphi 0, %s18
      %p15 = scmp.ge.s32.totalorder %s14, 4
      %s21 = sphi 0, %s33
      %s22 = sphi 0, %s29
      %s23 = sphi 0, %s21
      %s24 = sphi 0, %s22
      %s25 = sphi 0, %s23
      %s26 = sphi 0, %s24
      %s36 = sphi 0, %s38
      %s39 = sphi 0, %s36
      %s40 = sphi 0, %s39
      %s56 = sphi 0, %s40
      %s64 = sphi 0, %s66
      %s67 = sphi 0, %s64
      %s68 = sphi 0, %s67
      %s84 = sphi 0, %s68
      %s88 = sphi 0, %s88
      %s90 = sphi 0, %s88
      %s91 = sphi 0, %s90
      %s105 = sphi 0, %s91
      %s109 = sphi 0, %s109
      %s111 = sphi 0, %s109
      %s112 = sphi 0, %s111
      %s126 = sphi 0, %s112
      %s134 = sphi 0, %s136
      %s137 = sphi 0, %s134
      %s138 = sphi 0, %s137
      %s154 = sphi 0, %s138
    $region4: #{tpu_custom_call.1} parent=1 // loop_header_branch
      %17 = sbr.rel (%p15) target = $region8
    $region5: #{tpu_custom_call.1} parent=1 // loop_body
      %s19 = ssub.s32 %s14, 1
      %s20 = ssub.s32 %s14, 2
      %s27 = sadd.s32 1, %s22
      %p28 = scmp.ge.s32.totalorder %s27, 1
      %s29 = scalar_select %p28, 0, %s27
      %s30 = sadd.s32 1, %s21
      %s31 = scalar_select %p28, %s30, %s21
      %p32 = scmp.ge.s32.totalorder %s31, 2
      %s33 = scalar_select %p32, 0, %s31
      %s34 = ssub.s32 %s21, %s33
      %p35 = scmp.eq.s32.totalorder %s34, 0
      %s37 = sadd.s32 %s36, 1
      %s38 = scalar_select %p35, %s36, %s37
      %p41 = pneg %p35
      %p42 = scmp.eq.s32.totalorder %s14, 1
      %p43 = por %p41, %p42
      %p44 = scmp.ne.s32.totalorder %s36, %s39
      %p45 = scmp.eq.s32.totalorder %s14, 0
      %p46 = por %p44, %p45
      %p47 = scmp.ne.s32.totalorder %s36, %s39
      %p48 = scmp.eq.s32.totalorder %s19, 1
      %p49 = por %p47, %p48
      %p50 = scmp.ne.s32.totalorder %s39, %s40
      %p51 = scmp.eq.s32.totalorder %s19, 0
      %p52 = por %p50, %p51
      %p53 = scmp.ne.s32.totalorder %s39, %s40
      %p54 = scmp.eq.s32.totalorder %s20, 1
      %p55 = por %p53, %p54
      %p57 = scmp.ne.s32.totalorder %s40, %s56
      %p58 = scmp.eq.s32.totalorder %s20, 0
      %p59 = por %p57, %p58
      %s60 = ssub.s32 %s21, %s33
      %s61 = ssub.s32 %s22, %s29
      %s62 = sor.u32 %s60, %s61
      %p63 = scmp.eq.s32.totalorder %s62, 0
      %s65 = sadd.s32 %s64, 1
      %s66 = scalar_select %p63, %s64, %s65
      %p69 = pneg %p63
      %p70 = scmp.eq.s32.totalorder %s14, 1
      %p71 = por %p69, %p70
      %p72 = scmp.ne.s32.totalorder %s64, %s67
      %p73 = scmp.eq.s32.totalorder %s14, 0
      %p74 = por %p72, %p73
      %p75 = scmp.ne.s32.totalorder %s64, %s67
      %p76 = scmp.eq.s32.totalorder %s19, 1
      %p77 = por %p75, %p76
      %p78 = scmp.ne.s32.totalorder %s67, %s68
      %p79 = scmp.eq.s32.totalorder %s19, 0
      %p80 = por %p78, %p79
      %p81 = scmp.ne.s32.totalorder %s67, %s68
      %p82 = scmp.eq.s32.totalorder %s20, 1
      %p83 = por %p81, %p82
      %p85 = scmp.ne.s32.totalorder %s68, %s84
      %p86 = scmp.eq.s32.totalorder %s20, 0
      %p87 = por %p85, %p86
      %s89 = sadd.s32 %s88, 1
      %p92 = scmp.eq.s32.totalorder %s14, 1
      %p93 = scmp.ne.s32.totalorder %s88, %s90
      %p94 = scmp.eq.s32.totalorder %s14, 0
      %p95 = por %p93, %p94
      %p96 = scmp.ne.s32.totalorder %s88, %s90
      %p97 = scmp.eq.s32.totalorder %s19, 1
      %p98 = por %p96, %p97
      %p99 = scmp.ne.s32.totalorder %s90, %s91
      %p100 = scmp.eq.s32.totalorder %s19, 0
      %p101 = por %p99, %p100
      %p102 = scmp.ne.s32.totalorder %s90, %s91
      %p103 = scmp.eq.s32.totalorder %s20, 1
      %p104 = por %p102, %p103
      %p106 = scmp.ne.s32.totalorder %s91, %s105
      %p107 = scmp.eq.s32.totalorder %s20, 0
      %p108 = por %p106, %p107
      %s110 = sadd.s32 %s109, 1
      %p113 = scmp.eq.s32.totalorder %s14, 1
      %p114 = scmp.ne.s32.totalorder %s109, %s111
      %p115 = scmp.eq.s32.totalorder %s14, 0
      %p116 = por %p114, %p115
      %p117 = scmp.ne.s32.totalorder %s109, %s111
      %p118 = scmp.eq.s32.totalorder %s19, 1
      %p119 = por %p117, %p118
      %p120 = scmp.ne.s32.totalorder %s111, %s112
      %p121 = scmp.eq.s32.totalorder %s19, 0
      %p122 = por %p120, %p121
      %p123 = scmp.ne.s32.totalorder %s111, %s112
      %p124 = scmp.eq.s32.totalorder %s20, 1
      %p125 = por %p123, %p124
      %p127 = scmp.ne.s32.totalorder %s112, %s126
      %p128 = scmp.eq.s32.totalorder %s20, 0
      %p129 = por %p127, %p128
      %s130 = ssub.s32 %s21, %s33
      %s131 = ssub.s32 %s22, %s29
      %s132 = sor.u32 %s130, %s131
      %p133 = scmp.eq.s32.totalorder %s132, 0
      %s135 = sadd.s32 %s134, 1
      %s136 = scalar_select %p133, %s134, %s135
      %p139 = pneg %p133
      %p140 = scmp.eq.s32.totalorder %s14, 1
      %p141 = por %p139, %p140
      %p142 = scmp.ne.s32.totalorder %s134, %s137
      %p143 = scmp.eq.s32.totalorder %s14, 0
      %p144 = por %p142, %p143
      %p145 = scmp.ne.s32.totalorder %s134, %s137
      %p146 = scmp.eq.s32.totalorder %s19, 1
      %p147 = por %p145, %p146
      %p148 = scmp.ne.s32.totalorder %s137, %s138
      %p149 = scmp.eq.s32.totalorder %s19, 0
      %p150 = por %p148, %p149
      %p151 = scmp.ne.s32.totalorder %s137, %s138
      %p152 = scmp.eq.s32.totalorder %s20, 1
      %p153 = por %p151, %p152
      %p155 = scmp.ne.s32.totalorder %s138, %s154
      %p156 = scmp.eq.s32.totalorder %s20, 0
      %p157 = por %p155, %p156
      %p158 = scmp.le.s32.totalorder 1, %s14
      %p159 = scmp.lt.s32.totalorder %s14, 3
      %p160 = pnand %p158, %p159
      %p161 = pneg %p160
      // Predicated region
      $region9: #{tpu_custom_call.1} parent=5 // pred_check
        _
      $region10: #{tpu_custom_call.1} parent=5 // pred_check_branch
        %163 = sbr.rel (%p160) target = $region12
      $region11: #{tpu_custom_call.1} parent=5 // pred_region
        %s164 = ssub.s32 %s14, 1
        // Predicated region
        $region13: #{tpu_custom_call.1} parent=11 // pred_check
          %p165 = pneg %p101
        $region14: #{tpu_custom_call.1} parent=11 // pred_check_branch
          %167 = sbr.rel (%p165) target = $region16
        $region15: #{tpu_custom_call.1} parent=11 // pred_region
          _
        $region16: #{tpu_custom_call.1} parent=11 // pred_fallthru
          _
        // Predicated region
        $region17: #{tpu_custom_call.1} parent=11 // pred_check
          %p168 = pneg %p122
        $region18: #{tpu_custom_call.1} parent=11 // pred_check_branch
          %170 = sbr.rel (%p168) target = $region20
        $region19: #{tpu_custom_call.1} parent=11 // pred_region
          _
        $region20: #{tpu_custom_call.1} parent=11 // pred_fallthru
          _
      $region12: #{tpu_custom_call.1} parent=5 // pred_fallthru
        _
      %p171 = scmp.lt.s32.totalorder %s14, 2
      // Predicated region
      $region21: #{tpu_custom_call.1} parent=5 // pred_check
        %p172 = pneg %p171
      $region22: #{tpu_custom_call.1} parent=5 // pred_check_branch
        %174 = sbr.rel (%p172) target = $region24
      $region23: #{tpu_custom_call.1} parent=5 // pred_region
        // Predicated region
        $region25: #{tpu_custom_call.1} parent=23 // pred_check
          %p175 = pneg %p46
        $region26: #{tpu_custom_call.1} parent=23 // pred_check_branch
          %177 = sbr.rel (%p175) target = $region28
        $region27: #{tpu_custom_call.1} parent=23 // pred_region
          %p178 = scmp.lt.s32.totalorder %s21, 1
          %s179 = scalar_select %p178, %s21, 1
          %s180 = smul.addr %s179, 10
          %s181 = smul.addr %s180, 4
          %s182 = scalar_lea.vmem %s0, %s181
        $region28: #{tpu_custom_call.1} parent=23 // pred_fallthru
          _
        // Predicated region
        $region29: #{tpu_custom_call.1} parent=23 // pred_check
          %p183 = pneg %p74
        $region30: #{tpu_custom_call.1} parent=23 // pred_check_branch
          %185 = sbr.rel (%p183) target = $region32
        $region31: #{tpu_custom_call.1} parent=23 // pred_region
          %s186 = smul.u32 2, %s22
          %p187 = scmp.lt.s32.totalorder %s21, 1
          %s188 = scalar_select %p187, %s21, 1
          %p189 = scmp.lt.s32.totalorder %s186, 1
          %s190 = scalar_select %p189, %s186, 1
          %s191 = smul.addr %s188, 8
          %s192 = sadd.s32 %s190, %s191
          %s193 = smul.addr %s192, 8
          %s194 = scalar_lea.vmem %s1, %s193
          %s195 = smul.u32 2, %s22
        $region32: #{tpu_custom_call.1} parent=23 // pred_fallthru
          _
      $region24: #{tpu_custom_call.1} parent=5 // pred_fallthru
        _
      %p196 = scmp.le.s32.totalorder 1, %s14
      %p197 = scmp.lt.s32.totalorder %s14, 3
      %p198 = pnand %p196, %p197
      %p199 = pneg %p198
      // Predicated region
      $region33: #{tpu_custom_call.1} parent=5 // pred_check
        _
      $region34: #{tpu_custom_call.1} parent=5 // pred_check_branch
        %201 = sbr.rel (%p198) target = $region36
      $region35: #{tpu_custom_call.1} parent=5 // pred_region
        %s202 = ssub.s32 %s14, 1
        %p203 = scmp.lt.s32.totalorder %s23, 1
        %s204 = scalar_select %p203, %s23, 1
        %s205 = smul.addr %s204, 10
        %s206 = smul.addr %s205, 4
        %s207 = scalar_lea.vmem %s0, %s206
        %p208 = pneg %p52
        %p209 = pneg %p49
        %s210 = smul.u32 2, %s24
        %p211 = scmp.lt.s32.totalorder %s23, 1
        %s212 = scalar_select %p211, %s23, 1
        %p213 = scmp.lt.s32.totalorder %s210, 1
        %s214 = scalar_select %p213, %s210, 1
        %s215 = smul.addr %s212, 8
        %s216 = sadd.s32 %s214, %s215
        %s217 = smul.addr %s216, 8
        %s218 = scalar_lea.vmem %s1, %s217
        %p219 = pneg %p80
        %p220 = pneg %p77
        %p221 = pneg %p101
        %p222 = pneg %p98
        %p223 = pneg %p122
        %p224 = pneg %p119
        %p225 = pneg %p150
        %p226 = pneg %p147
        %s227 = sand.u32 %s137, 1
        %s228 = scalar_lea.sflag [#allocation5], %s227
        %s229 = sand.u32 %s137, 1
        %s230 = smul.addr %s229, 64
        %s231 = scalar_lea.vmem [#allocation4], %s230
        %p232 = scmp.lt.s32.totalorder %s23, 1
        %s233 = scalar_select %p232, %s23, 1
        %s234 = smul.addr %s233, 10
        %s235 = smul.addr %s234, 4
        %s236 = scalar_lea.vmem %s0, %s235
        %s237 = smul.u32 2, %s24
        %p238 = scmp.lt.s32.totalorder %s23, 1
        %s239 = scalar_select %p238, %s23, 1
        %p240 = scmp.lt.s32.totalorder %s237, 1
        %s241 = scalar_select %p240, %s237, 1
        %s242 = smul.addr %s239, 8
        %s243 = sadd.s32 %s241, %s242
        %s244 = smul.addr %s243, 8
        %s245 = scalar_lea.vmem %s1, %s244
        %s246 = smul.u32 2, %s24
        %s247 = smul.u32 2, %s24
        %v249 = vld [vmem:[%s2] sm:$0xf]
        %v250 = vld [vmem:[%s2 + $0x4] sm:$0xf]
        %v251 = vld [vmem:[%s2 + $0x8] sm:$0xf]
        %v252 = vld [vmem:[%s2 + $0xc] sm:$0xf]
        %v253 = vld [vmem:[%s2 + $0x10] sm:$0xf]
        %v254 = vld [vmem:[%s2 + $0x14] sm:$0xf]
        %v255 = vld [vmem:[%s2 + $0x18] sm:$0xf]
        %v256 = vld [vmem:[%s2 + $0x1c] sm:$0xf]
        %p257 = scmp.eq.s32.totalorder %s24, 0
        // Predicated region
        $region37: #{tpu_custom_call.1} parent=35 // pred_check
          %p258 = pneg %p257
        $region38: #{tpu_custom_call.1} parent=35 // pred_check_branch
          %260 = sbr.rel (%p258) target = $region40
        $region39: #{tpu_custom_call.1} parent=35 // pred_region
          %v261 = vld [vmem:[%s236] sm:$0xff]
          %v262 = vld [vmem:[%s236 + $0x8] sm:$0xff]
          %v263 = vld [vmem:[%s236 + $0x10] sm:$0xff]
          %v264 = vld [vmem:[%s236 + $0x18] sm:$0xff]
          %v265 = vld [vmem:[%s236 + $0x20] sm:$0x11]
          %v272 = vunpack.c.l.b16 %v249
          %v273 = vunpack.c.l.b16 %v250
          %v274 = vunpack.c.l.b16 %v251
          %v275 = vunpack.c.l.b16 %v252
          %v276 = vunpack.c.l.b16 %v253
          %v277 = vunpack.c.l.b16 %v254
          %v278 = vpack.c.b16 %v273, %v272
          %v279 = vpack.c.b16 %v275, %v274
          %v280 = vpack.c.b16 %v277, %v276
          %v286 = vunpack.c.l.b16 %v261
          %v287 = vunpack.c.h.b16 %v261
          %v288 = vunpack.c.l.b16 %v262
          %v289 = vunpack.c.h.b16 %v262
          %v290 = vunpack.c.l.b16 %v263
          %v291 = vunpack.c.h.b16 %v263
          %v292 = vunpack.c.l.b16 %v264
          %v293 = vunpack.c.h.b16 %v264
          %v294 = vunpack.c.l.b16 %v265
          %v295 = vunpack.c.h.b16 %v265
          %v296 = vpack.c.b16 %v288, %v286
          %v297 = vpack.c.b16 %v289, %v287
          %v298 = vpack.c.b16 %v292, %v290
          %v299 = vpack.c.b16 %v293, %v291
          %v300 = vpack.c.b16 %v294, %v294
          %v301 = vpack.c.b16 %v295, %v295
          %vm306 = vcmask 269312
          %v308 = vsel %vm306, %v278, 0
          %v311 = vsel %vm306, %v279, 0
          %v314 = vsel %vm306, %v280, 0
          %vm316 = vcmask 1040384
          %v317 = vsel 0, 4294967295, 65535
          %v318 = vsel %vm316, %v317, 0
          %v320 = vand.u32 %v300, %v318
          %v323 = vand.u32 %v301, %v318
          %325 = vmatprep.subr.bf16.mxu0 0
          %326 = vmatpush1.bf16.msra.mxu0 0
          %327 = vmatprep.subr.bf16.mxu0 0
          %328 = vmatpush1.bf16.msra.mxu0 0
          %329 = vmatprep.subr.bf16.mxu0 0
          %330 = vmatpush1.bf16.msra.mxu0 0
          %331 = vmatprep.subr.bf16.mxu0 0
          %332 = vmatpush1.bf16.msra.mxu0 0
          %333 = vmatprep.subr.bf16.mxu0 0
          %334 = vmatpush1.bf16.msra.mxu0 0
          %335 = vmatprep.subr.bf16.mxu0 %v323
          %336 = vmatpush1.bf16.msra.mxu0 %v320
          %337 = vmatprep.subr.bf16.mxu0 %v299
          %338 = vmatpush1.bf16.msra.mxu0 %v298
          %339 = vmatprep.subr.bf16.mxu0 %v297
          %340 = vmatpush1.bf16.msra.mxu0 %v296
          %341 = vmatprep.subr.bf16.mxu0 0
          %342 = vmatpush2.bf16.msra.mxu0 0
          %343 = vmatprep.subr.bf16.mxu0 0
          %344 = vmatpush2.bf16.msra.mxu0 0
          %345 = vmatprep.subr.bf16.mxu0 0
          %346 = vmatpush2.bf16.msra.mxu0 0
          %347 = vmatprep.subr.bf16.mxu0 0
          %348 = vmatpush2.bf16.msra.mxu0 0
          %349 = vmatprep.subr.bf16.mxu0 0
          %350 = vmatpush2.bf16.msra.mxu0 0
          %351 = vmatprep.subr.bf16.mxu0 0
          %352 = vmatpush2.bf16.msra.mxu0 0
          %353 = vmatprep.subr.bf16.mxu0 0
          %354 = vmatpush2.bf16.msra.mxu0 0
          %355 = vmatprep.subr.bf16.mxu0 0
          %356 = vmatpush2.bf16.msra.mxu0 0
          %357 = vmatprep.mubr.bf16.mxu0 0
          %358 = vmatmul.mubr.bf16.gmra.mxu0 %v308
          %v359 = vpop.f32.mrf.mxu0
          %v360 = vadd.f32 0.0, %v359
          %v361 = vpop.f32.mrf.mxu0
          %v362 = vadd.f32 0.0, %v361
          %v363 = vpop.f32.mrf.mxu0
          %v364 = vadd.f32 0.0, %v363
          %v365 = vpop.f32.mrf.mxu0
          %v366 = vadd.f32 0.0, %v365
          %367 = vmatprep.mubr.bf16.mxu0 0
          %368 = vmatmul.mubr.bf16.gmra.mxu0 %v311
          %v369 = vpop.f32.mrf.mxu0
          %v370 = vadd.f32 0.0, %v369
          %v371 = vpop.f32.mrf.mxu0
          %v372 = vadd.f32 0.0, %v371
          %v373 = vpop.f32.mrf.mxu0
          %v374 = vadd.f32 0.0, %v373
          %v375 = vpop.f32.mrf.mxu0
          %v376 = vadd.f32 0.0, %v375
          %377 = vmatprep.mubr.bf16.mxu0 0
          %378 = vmatmul.mubr.bf16.gmra.mxu0 %v314
          %v379 = vpop.f32.mrf.mxu0
          %v380 = vadd.f32 0.0, %v379
          %v381 = vpop.f32.mrf.mxu0
          %v382 = vadd.f32 0.0, %v381
          %v383 = vpop.f32.mrf.mxu0
          %v384 = vadd.f32 0.0, %v383
          %v385 = vpop.f32.mrf.mxu0
          %v386 = vadd.f32 0.0, %v385
          %387 = vdwg.mxu0
          %v388 = vpack.c.bf16 %v364, %v360
          %v389 = vpack.c.bf16 %v366, %v362
          %v390 = vpack.c.bf16 %v374, %v370
          %v391 = vpack.c.bf16 %v376, %v372
          %v392 = vpack.c.bf16 %v384, %v380
          %v393 = vpack.c.bf16 %v386, %v382
          %v400 = vunpack.c.l.b16 %v388
          %v401 = vunpack.c.l.b16 %v389
          %v402 = vunpack.c.h.b16 %v388
          %v403 = vunpack.c.h.b16 %v389
          %v404 = vunpack.c.l.b16 %v390
          %v405 = vunpack.c.l.b16 %v391
          %v406 = vunpack.c.h.b16 %v390
          %v407 = vunpack.c.h.b16 %v391
          %v408 = vunpack.c.l.b16 %v392
          %v409 = vunpack.c.l.b16 %v393
          %v410 = vunpack.c.h.b16 %v392
          %v411 = vunpack.c.h.b16 %v393
          %v412 = vpack.c.b16 %v401, %v400
          %v413 = vpack.c.b16 %v403, %v402
          %v414 = vpack.c.b16 %v405, %v404
          %v415 = vpack.c.b16 %v407, %v406
          %v416 = vpack.c.b16 %v409, %v408
          %v417 = vpack.c.b16 %v411, %v410
          %424 = vst [vmem:[#allocation2] sm:$0xff] %v412
          %425 = vst [vmem:[#allocation2 + $0x8] sm:$0xff] %v413
          %426 = vst [vmem:[#allocation2 + $0x10] sm:$0xff] %v414
          %427 = vst [vmem:[#allocation2 + $0x18] sm:$0xff] %v415
          %428 = vst [vmem:[#allocation2 + $0x20] sm:$0xff] %v416
          %429 = vst [vmem:[#allocation2 + $0x28] sm:$0xff] %v417
        $region40: #{tpu_custom_call.1} parent=35 // pred_fallthru
          _
        %s430 = smul.u32 %s24, 256
        %s431 = sshra.s32 %s430, 7
        %s432 = sand.u32 %s430, 127
        %s433 = smul.addr %s431, 4
        %s434 = scalar_lea.vmem %s236, %s433
        %v435 = vld [vmem:[%s434] sm:$0xff]
        %v436 = vld [vmem:[%s434 + $0x8] sm:$0xff]
        %v437 = vld [vmem:[%s434 + $0x10] sm:$0xff]
        %v438 = vld [vmem:[%s434 + $0x18] sm:$0xff]
        %v439 = vld [vmem:[%s434 + $0x20] sm:$0x11]
        %v442 = vunpack.c.l.b16 %v255
        %v443 = vunpack.c.l.b16 %v256
        %v444 = vpack.c.b16 %v443, %v442
        %v450 = vunpack.c.l.b16 %v435
        %v451 = vunpack.c.h.b16 %v435
        %v452 = vunpack.c.l.b16 %v436
        %v453 = vunpack.c.h.b16 %v436
        %v454 = vunpack.c.l.b16 %v437
        %v455 = vunpack.c.h.b16 %v437
        %v456 = vunpack.c.l.b16 %v438
        %v457 = vunpack.c.h.b16 %v438
        %v458 = vunpack.c.l.b16 %v439
        %v459 = vunpack.c.h.b16 %v439
        %v460 = vpack.c.b16 %v452, %v450
        %v461 = vpack.c.b16 %v453, %v451
        %v462 = vpack.c.b16 %v456, %v454
        %v463 = vpack.c.b16 %v457, %v455
        %v464 = vpack.c.b16 %v458, %v458
        %v465 = vpack.c.b16 %v459, %v459
        %vm470 = vcmask 269312
        %v472 = vsel %vm470, %v444, 0
        %vm474 = vcmask 1040384
        %v475 = vsel 0, 4294967295, 65535
        %v476 = vsel %vm474, %v475, 0
        %v478 = vand.u32 %v464, %v476
        %v481 = vand.u32 %v465, %v476
        %483 = vmatprep.subr.bf16.mxu0 0
        %484 = vmatpush1.bf16.msra.mxu0 0
        %485 = vmatprep.subr.bf16.mxu0 0
        %486 = vmatpush1.bf16.msra.mxu0 0
        %487 = vmatprep.subr.bf16.mxu0 0
        %488 = vmatpush1.bf16.msra.mxu0 0
        %489 = vmatprep.subr.bf16.mxu0 0
        %490 = vmatpush1.bf16.msra.mxu0 0
        %491 = vmatprep.subr.bf16.mxu0 0
        %492 = vmatpush1.bf16.msra.mxu0 0
        %493 = vmatprep.subr.bf16.mxu0 %v481
        %494 = vmatpush1.bf16.msra.mxu0 %v478
        %495 = vmatprep.subr.bf16.mxu0 %v463
        %496 = vmatpush1.bf16.msra.mxu0 %v462
        %497 = vmatprep.subr.bf16.mxu0 %v461
        %498 = vmatpush1.bf16.msra.mxu0 %v460
        %499 = vmatprep.subr.bf16.mxu0 0
        %500 = vmatpush2.bf16.msra.mxu0 0
        %501 = vmatprep.subr.bf16.mxu0 0
        %502 = vmatpush2.bf16.msra.mxu0 0
        %503 = vmatprep.subr.bf16.mxu0 0
        %504 = vmatpush2.bf16.msra.mxu0 0
        %505 = vmatprep.subr.bf16.mxu0 0
        %506 = vmatpush2.bf16.msra.mxu0 0
        %507 = vmatprep.subr.bf16.mxu0 0
        %508 = vmatpush2.bf16.msra.mxu0 0
        %509 = vmatprep.subr.bf16.mxu0 0
        %510 = vmatpush2.bf16.msra.mxu0 0
        %511 = vmatprep.subr.bf16.mxu0 0
        %512 = vmatpush2.bf16.msra.mxu0 0
        %513 = vmatprep.subr.bf16.mxu0 0
        %514 = vmatpush2.bf16.msra.mxu0 0
        %515 = vmatprep.mubr.bf16.mxu0 0
        %516 = vmatmul.mubr.bf16.gmra.mxu0 %v472
        %v517 = vpop.f32.mrf.mxu0
        %v518 = vadd.f32 0.0, %v517
        %v519 = vpop.f32.mrf.mxu0
        %v520 = vadd.f32 0.0, %v519
        %v521 = vpop.f32.mrf.mxu0
        %v522 = vadd.f32 0.0, %v521
        %v523 = vpop.f32.mrf.mxu0
        %v524 = vadd.f32 0.0, %v523
        %525 = vdwg.mxu0
        %v526 = vld [vmem:[#allocation2] sm:$0xff]
        %v527 = vld [vmem:[#allocation2 + $0x8] sm:$0xff]
        %v528 = vld [vmem:[#allocation2 + $0x10] sm:$0xff]
        %v529 = vld [vmem:[#allocation2 + $0x18] sm:$0xff]
        %v530 = vld [vmem:[#allocation2 + $0x20] sm:$0xff]
        %v531 = vld [vmem:[#allocation2 + $0x28] sm:$0xff]
        %v532 = vpack.c.bf16 %v522, %v518
        %v533 = vpack.c.bf16 %v524, %v520
        %v536 = vunpack.c.l.b16 %v526
        %v537 = vunpack.c.h.b16 %v526
        %v538 = vunpack.c.l.b16 %v527
        %v539 = vunpack.c.h.b16 %v527
        %v540 = vpack.c.b16 %v538, %v536
        %v541 = vpack.c.b16 %v539, %v537
        %544 = vxpose.xlu0.c.b16.start [1/8] %v540, 128
        %545 = vxpose.xlu0.c.b16.cont [2/8] 0, 128
        %546 = vxpose.xlu0.c.b16.cont [3/8] 0, 128
        %547 = vxpose.xlu0.c.b16.cont [4/8] 0, 128
        %548 = vxpose.xlu0.c.b16.cont [5/8] 0, 128
        %549 = vxpose.xlu0.c.b16.cont [6/8] 0, 128
        %550 = vxpose.xlu0.c.b16.cont [7/8] 0, 128
        %551 = vxpose.xlu0.c.b16.end [8/8] 0, 128
        %v552 = vpop.trf.xlu0
        %v553 = vpop.trf.xlu0
        %v554 = vpop.trf.xlu0
        %v555 = vpop.trf.xlu0
        %v556 = vpop.trf.xlu0
        %v557 = vpop.trf.xlu0
        %v558 = vpop.trf.xlu0
        %v559 = vpop.trf.xlu0
        %560 = vxpose.xlu0.c.b16.start [1/8] %v541, 128
        %561 = vxpose.xlu0.c.b16.cont [2/8] 0, 128
        %562 = vxpose.xlu0.c.b16.cont [3/8] 0, 128
        %563 = vxpose.xlu0.c.b16.cont [4/8] 0, 128
        %564 = vxpose.xlu0.c.b16.cont [5/8] 0, 128
        %565 = vxpose.xlu0.c.b16.cont [6/8] 0, 128
        %566 = vxpose.xlu0.c.b16.cont [7/8] 0, 128
        %567 = vxpose.xlu0.c.b16.end [8/8] 0, 128
        %v568 = vpop.trf.xlu0
        %v569 = vpop.trf.xlu0
        %v570 = vpop.trf.xlu0
        %v571 = vpop.trf.xlu0
        %v572 = vpop.trf.xlu0
        %v573 = vpop.trf.xlu0
        %v574 = vpop.trf.xlu0
        %v575 = vpop.trf.xlu0
        %vm576 = vcmask 130048
        %v578 = vsel %vm576, %v552, 0
        %v581 = vsel %vm576, %v553, 0
        %v584 = vsel %vm576, %v554, 0
        %v587 = vsel %vm576, %v555, 0
        %v590 = vsel %vm576, %v556, 0
        %v593 = vsel %vm576, %v557, 0
        %v596 = vsel %vm576, %v558, 0
        %v599 = vsel %vm576, %v559, 0
        %v602 = vsel %vm576, %v568, 0
        %v605 = vsel %vm576, %v569, 0
        %v608 = vsel %vm576, %v570, 0
        %v611 = vsel %vm576, %v571, 0
        %v614 = vsel %vm576, %v572, 0
        %v617 = vsel %vm576, %v573, 0
        %v620 = vsel %vm576, %v574, 0
        %v623 = vsel %vm576, %v575, 0
        %625 = vmatprep.subr.bf16.mxu0 0
        %626 = vmatpush1.bf16.msra.mxu0 0
        %627 = vmatprep.subr.bf16.mxu0 0
        %628 = vmatpush1.bf16.msra.mxu0 0
        %629 = vmatprep.subr.bf16.mxu0 0
        %630 = vmatpush1.bf16.msra.mxu0 0
        %631 = vmatprep.subr.bf16.mxu0 0
        %632 = vmatpush1.bf16.msra.mxu0 0
        %633 = vmatprep.subr.bf16.mxu0 0
        %634 = vmatpush1.bf16.msra.mxu0 0
        %635 = vmatprep.subr.bf16.mxu0 0
        %636 = vmatpush1.bf16.msra.mxu0 0
        %637 = vmatprep.subr.bf16.mxu0 0
        %638 = vmatpush1.bf16.msra.mxu0 0
        %639 = vmatprep.subr.bf16.mxu0 %v533
        %640 = vmatpush1.bf16.msra.mxu0 %v532
        %641 = vmatprep.subr.bf16.mxu0 0
        %642 = vmatpush2.bf16.msra.mxu0 0
        %643 = vmatprep.subr.bf16.mxu0 0
        %644 = vmatpush2.bf16.msra.mxu0 0
        %645 = vmatprep.subr.bf16.mxu0 0
        %646 = vmatpush2.bf16.msra.mxu0 0
        %647 = vmatprep.subr.bf16.mxu0 0
        %648 = vmatpush2.bf16.msra.mxu0 0
        %649 = vmatprep.subr.bf16.mxu0 0
        %650 = vmatpush2.bf16.msra.mxu0 0
        %651 = vmatprep.subr.bf16.mxu0 0
        %652 = vmatpush2.bf16.msra.mxu0 0
        %653 = vmatprep.subr.bf16.mxu0 0
        %654 = vmatpush2.bf16.msra.mxu0 0
        %655 = vmatprep.subr.bf16.mxu0 0
        %656 = vmatpush2.bf16.msra.mxu0 0
        %657 = vmatprep.mubr.bf16.mxu0 0
        %658 = vmatmul.mubr.bf16.gmra.mxu0 %v578
        %v659 = vpop.f32.mrf.mxu0
        %v660 = vadd.f32 0.0, %v659
        %v661 = vpop.f32.mrf.mxu0
        %v662 = vadd.f32 0.0, %v661
        %v663 = vpop.f32.mrf.mxu0
        %v664 = vadd.f32 0.0, %v663
        %v665 = vpop.f32.mrf.mxu0
        %v666 = vadd.f32 0.0, %v665
        %667 = vmatprep.mubr.bf16.mxu0 0
        %668 = vmatmul.mubr.bf16.gmra.mxu0 %v581
        %v669 = vpop.f32.mrf.mxu0
        %v670 = vadd.f32 0.0, %v669
        %v671 = vpop.f32.mrf.mxu0
        %v672 = vadd.f32 0.0, %v671
        %v673 = vpop.f32.mrf.mxu0
        %v674 = vadd.f32 0.0, %v673
        %v675 = vpop.f32.mrf.mxu0
        %v676 = vadd.f32 0.0, %v675
        %677 = vmatprep.mubr.bf16.mxu0 0
        %678 = vmatmul.mubr.bf16.gmra.mxu0 %v584
        %v679 = vpop.f32.mrf.mxu0
        %v680 = vadd.f32 0.0, %v679
        %v681 = vpop.f32.mrf.mxu0
        %v682 = vadd.f32 0.0, %v681
        %v683 = vpop.f32.mrf.mxu0
        %v684 = vadd.f32 0.0, %v683
        %v685 = vpop.f32.mrf.mxu0
        %v686 = vadd.f32 0.0, %v685
        %687 = vmatprep.mubr.bf16.mxu0 0
        %688 = vmatmul.mubr.bf16.gmra.mxu0 %v587
        %v689 = vpop.f32.mrf.mxu0
        %v690 = vadd.f32 0.0, %v689
        %v691 = vpop.f32.mrf.mxu0
        %v692 = vadd.f32 0.0, %v691
        %v693 = vpop.f32.mrf.mxu0
        %v694 = vadd.f32 0.0, %v693
        %v695 = vpop.f32.mrf.mxu0
        %v696 = vadd.f32 0.0, %v695
        %697 = vmatprep.mubr.bf16.mxu0 0
        %698 = vmatmul.mubr.bf16.gmra.mxu0 %v590
        %v699 = vpop.f32.mrf.mxu0
        %v700 = vadd.f32 0.0, %v699
        %v701 = vpop.f32.mrf.mxu0
        %v702 = vadd.f32 0.0, %v701
        %v703 = vpop.f32.mrf.mxu0
        %v704 = vadd.f32 0.0, %v703
        %v705 = vpop.f32.mrf.mxu0
        %v706 = vadd.f32 0.0, %v705
        %707 = vmatprep.mubr.bf16.mxu0 0
        %708 = vmatmul.mubr.bf16.gmra.mxu0 %v593
        %v709 = vpop.f32.mrf.mxu0
        %v710 = vadd.f32 0.0, %v709
        %v711 = vpop.f32.mrf.mxu0
        %v712 = vadd.f32 0.0, %v711
        %v713 = vpop.f32.mrf.mxu0
        %v714 = vadd.f32 0.0, %v713
        %v715 = vpop.f32.mrf.mxu0
        %v716 = vadd.f32 0.0, %v715
        %717 = vmatprep.mubr.bf16.mxu0 0
        %718 = vmatmul.mubr.bf16.gmra.mxu0 %v596
        %v719 = vpop.f32.mrf.mxu0
        %v720 = vadd.f32 0.0, %v719
        %v721 = vpop.f32.mrf.mxu0
        %v722 = vadd.f32 0.0, %v721
        %v723 = vpop.f32.mrf.mxu0
        %v724 = vadd.f32 0.0, %v723
        %v725 = vpop.f32.mrf.mxu0
        %v726 = vadd.f32 0.0, %v725
        %727 = vmatprep.mubr.bf16.mxu0 0
        %728 = vmatmul.mubr.bf16.gmra.mxu0 %v599
        %v729 = vpop.f32.mrf.mxu0
        %v730 = vadd.f32 0.0, %v729
        %v731 = vpop.f32.mrf.mxu0
        %v732 = vadd.f32 0.0, %v731
        %v733 = vpop.f32.mrf.mxu0
        %v734 = vadd.f32 0.0, %v733
        %v735 = vpop.f32.mrf.mxu0
        %v736 = vadd.f32 0.0, %v735
        %737 = vmatprep.mubr.bf16.mxu0 0
        %738 = vmatmul.mubr.bf16.gmra.mxu0 %v602
        %v739 = vpop.f32.mrf.mxu0
        %v740 = vadd.f32 0.0, %v739
        %v741 = vpop.f32.mrf.mxu0
        %v742 = vadd.f32 0.0, %v741
        %v743 = vpop.f32.mrf.mxu0
        %v744 = vadd.f32 0.0, %v743
        %v745 = vpop.f32.mrf.mxu0
        %v746 = vadd.f32 0.0, %v745
        %747 = vmatprep.mubr.bf16.mxu0 0
        %748 = vmatmul.mubr.bf16.gmra.mxu0 %v605
        %v749 = vpop.f32.mrf.mxu0
        %v750 = vadd.f32 0.0, %v749
        %v751 = vpop.f32.mrf.mxu0
        %v752 = vadd.f32 0.0, %v751
        %v753 = vpop.f32.mrf.mxu0
        %v754 = vadd.f32 0.0, %v753
        %v755 = vpop.f32.mrf.mxu0
        %v756 = vadd.f32 0.0, %v755
        %757 = vmatprep.mubr.bf16.mxu0 0
        %758 = vmatmul.mubr.bf16.gmra.mxu0 %v608
        %v759 = vpop.f32.mrf.mxu0
        %v760 = vadd.f32 0.0, %v759
        %v761 = vpop.f32.mrf.mxu0
        %v762 = vadd.f32 0.0, %v761
        %v763 = vpop.f32.mrf.mxu0
        %v764 = vadd.f32 0.0, %v763
        %v765 = vpop.f32.mrf.mxu0
        %v766 = vadd.f32 0.0, %v765
        %767 = vmatprep.mubr.bf16.mxu0 0
        %768 = vmatmul.mubr.bf16.gmra.mxu0 %v611
        %v769 = vpop.f32.mrf.mxu0
        %v770 = vadd.f32 0.0, %v769
        %v771 = vpop.f32.mrf.mxu0
        %v772 = vadd.f32 0.0, %v771
        %v773 = vpop.f32.mrf.mxu0
        %v774 = vadd.f32 0.0, %v773
        %v775 = vpop.f32.mrf.mxu0
        %v776 = vadd.f32 0.0, %v775
        %777 = vmatprep.mubr.bf16.mxu0 0
        %778 = vmatmul.mubr.bf16.gmra.mxu0 %v614
        %v779 = vpop.f32.mrf.mxu0
        %v780 = vadd.f32 0.0, %v779
        %v781 = vpop.f32.mrf.mxu0
        %v782 = vadd.f32 0.0, %v781
        %v783 = vpop.f32.mrf.mxu0
        %v784 = vadd.f32 0.0, %v783
        %v785 = vpop.f32.mrf.mxu0
        %v786 = vadd.f32 0.0, %v785
        %787 = vmatprep.mubr.bf16.mxu0 0
        %788 = vmatmul.mubr.bf16.gmra.mxu0 %v617
        %v789 = vpop.f32.mrf.mxu0
        %v790 = vadd.f32 0.0, %v789
        %v791 = vpop.f32.mrf.mxu0
        %v792 = vadd.f32 0.0, %v791
        %v793 = vpop.f32.mrf.mxu0
        %v794 = vadd.f32 0.0, %v793
        %v795 = vpop.f32.mrf.mxu0
        %v796 = vadd.f32 0.0, %v795
        %797 = vmatprep.mubr.bf16.mxu0 0
        %798 = vmatmul.mubr.bf16.gmra.mxu0 %v620
        %v799 = vpop.f32.mrf.mxu0
        %v800 = vadd.f32 0.0, %v799
        %v801 = vpop.f32.mrf.mxu0
        %v802 = vadd.f32 0.0, %v801
        %v803 = vpop.f32.mrf.mxu0
        %v804 = vadd.f32 0.0, %v803
        %v805 = vpop.f32.mrf.mxu0
        %v806 = vadd.f32 0.0, %v805
        %807 = vmatprep.mubr.bf16.mxu0 0
        %808 = vmatmul.mubr.bf16.gmra.mxu0 %v623
        %v809 = vpop.f32.mrf.mxu0
        %v810 = vadd.f32 0.0, %v809
        %v811 = vpop.f32.mrf.mxu0
        %v812 = vadd.f32 0.0, %v811
        %v813 = vpop.f32.mrf.mxu0
        %v814 = vadd.f32 0.0, %v813
        %v815 = vpop.f32.mrf.mxu0
        %v816 = vadd.f32 0.0, %v815
        %817 = vdwg.mxu0
        %v818 = vmax.f32 %v660, %v670
        %v819 = vmax.f32 %v664, %v674
        %v820 = vmax.f32 %v818, %v680
        %v821 = vmax.f32 %v819, %v684
        %v822 = vmax.f32 %v820, %v690
        %v823 = vmax.f32 %v821, %v694
        %v824 = vmax.f32 %v822, %v700
        %v825 = vmax.f32 %v823, %v704
        %v826 = vmax.f32 %v824, %v710
        %v827 = vmax.f32 %v825, %v714
        %v828 = vmax.f32 %v826, %v720
        %v829 = vmax.f32 %v827, %v724
        %v830 = vmax.f32 %v828, %v730
        %v831 = vmax.f32 %v829, %v734
        %v832 = vmax.f32 %v830, %v740
        %v833 = vmax.f32 %v831, %v744
        %v834 = vmax.f32 %v832, %v750
        %v835 = vmax.f32 %v833, %v754
        %v836 = vmax.f32 %v834, %v760
        %v837 = vmax.f32 %v835, %v764
        %v838 = vmax.f32 %v836, %v770
        %v839 = vmax.f32 %v837, %v774
        %v840 = vmax.f32 %v838, %v780
        %v841 = vmax.f32 %v839, %v784
        %v842 = vmax.f32 %v840, %v790
        %v843 = vmax.f32 %v841, %v794
        %v844 = vmax.f32 %v842, %v800
        %v845 = vmax.f32 %v843, %v804
        %v846 = vmax.f32 %v844, %v810
        %v847 = vmax.f32 %v845, %v814
        %v848 = vmax.f32 %v846, %v847
        %v849 = vrot.slane %v848, 4
        %v850 = vmax.f32 %v848, %v849
        %v851 = vrot.slane %v850, 2
        %v852 = vmax.f32 %v850, %v851
        %v853 = vrot.slane %v852, 1
        %v854 = vmax.f32 %v852, %v853
        %v855 = vmax.f32 %v662, %v672
        %v856 = vmax.f32 %v666, %v676
        %v857 = vmax.f32 %v855, %v682
        %v858 = vmax.f32 %v856, %v686
        %v859 = vmax.f32 %v857, %v692
        %v860 = vmax.f32 %v858, %v696
        %v861 = vmax.f32 %v859, %v702
        %v862 = vmax.f32 %v860, %v706
        %v863 = vmax.f32 %v861, %v712
        %v864 = vmax.f32 %v862, %v716
        %v865 = vmax.f32 %v863, %v722
        %v866 = vmax.f32 %v864, %v726
        %v867 = vmax.f32 %v865, %v732
        %v868 = vmax.f32 %v866, %v736
        %v869 = vmax.f32 %v867, %v742
        %v870 = vmax.f32 %v868, %v746
        %v871 = vmax.f32 %v869, %v752
        %v872 = vmax.f32 %v870, %v756
        %v873 = vmax.f32 %v871, %v762
        %v874 = vmax.f32 %v872, %v766
        %v875 = vmax.f32 %v873, %v772
        %v876 = vmax.f32 %v874, %v776
        %v877 = vmax.f32 %v875, %v782
        %v878 = vmax.f32 %v876, %v786
        %v879 = vmax.f32 %v877, %v792
        %v880 = vmax.f32 %v878, %v796
        %v881 = vmax.f32 %v879, %v802
        %v882 = vmax.f32 %v880, %v806
        %v883 = vmax.f32 %v881, %v812
        %v884 = vmax.f32 %v882, %v816
        %v885 = vmax.f32 %v883, %v884
        %v886 = vrot.slane %v885, 4
        %v887 = vmax.f32 %v885, %v886
        %v888 = vrot.slane %v887, 2
        %v889 = vmax.f32 %v887, %v888
        %v890 = vrot.slane %v889, 1
        %v891 = vmax.f32 %v889, %v890
        %v892 = vsub.f32 %v660, %v854
        %v893 = vsub.f32 %v662, %v891
        %v894 = vsub.f32 %v664, %v854
        %v895 = vsub.f32 %v666, %v891
        %v896 = vsub.f32 %v670, %v854
        %v897 = vsub.f32 %v672, %v891
        %v898 = vsub.f32 %v674, %v854
        %v899 = vsub.f32 %v676, %v891
        %v900 = vsub.f32 %v680, %v854
        %v901 = vsub.f32 %v682, %v891
        %v902 = vsub.f32 %v684, %v854
        %v903 = vsub.f32 %v686, %v891
        %v904 = vsub.f32 %v690, %v854
        %v905 = vsub.f32 %v692, %v891
        %v906 = vsub.f32 %v694, %v854
        %v907 = vsub.f32 %v696, %v891
        %v908 = vsub.f32 %v700, %v854
        %v909 = vsub.f32 %v702, %v891
        %v910 = vsub.f32 %v704, %v854
        %v911 = vsub.f32 %v706, %v891
        %v912 = vsub.f32 %v710, %v854
        %v913 = vsub.f32 %v712, %v891
        %v914 = vsub.f32 %v714, %v854
        %v915 = vsub.f32 %v716, %v891
        %v916 = vsub.f32 %v720, %v854
        %v917 = vsub.f32 %v722, %v891
        %v918 = vsub.f32 %v724, %v854
        %v919 = vsub.f32 %v726, %v891
        %v920 = vsub.f32 %v730, %v854
        %v921 = vsub.f32 %v732, %v891
        %v922 = vsub.f32 %v734, %v854
        %v923 = vsub.f32 %v736, %v891
        %v924 = vsub.f32 %v740, %v854
        %v925 = vsub.f32 %v742, %v891
        %v926 = vsub.f32 %v744, %v854
        %v927 = vsub.f32 %v746, %v891
        %v928 = vsub.f32 %v750, %v854
        %v929 = vsub.f32 %v752, %v891
        %v930 = vsub.f32 %v754, %v854
        %v931 = vsub.f32 %v756, %v891
        %v932 = vsub.f32 %v760, %v854
        %v933 = vsub.f32 %v762, %v891
        %v934 = vsub.f32 %v764, %v854
        %v935 = vsub.f32 %v766, %v891
        %v936 = vsub.f32 %v770, %v854
        %v937 = vsub.f32 %v772, %v891
        %v938 = vsub.f32 %v774, %v854
        %v939 = vsub.f32 %v776, %v891
        %v940 = vsub.f32 %v780, %v854
        %v941 = vsub.f32 %v782, %v891
        %v942 = vsub.f32 %v784, %v854
        %v943 = vsub.f32 %v786, %v891
        %v944 = vsub.f32 %v790, %v854
        %v945 = vsub.f32 %v792, %v891
        %v946 = vsub.f32 %v794, %v854
        %v947 = vsub.f32 %v796, %v891
        %v948 = vsub.f32 %v800, %v854
        %v949 = vsub.f32 %v802, %v891
        %v950 = vsub.f32 %v804, %v854
        %v951 = vsub.f32 %v806, %v891
        %v952 = vsub.f32 %v810, %v854
        %v953 = vsub.f32 %v812, %v891
        %v954 = vsub.f32 %v814, %v854
        %v955 = vsub.f32 %v816, %v891
        %v956 = vmul.f32 %v892, 1.442695
        %v957 = vpow.pop %v956
        %v958 = vmul.f32 %v893, 1.442695
        %v959 = vpow.pop %v958
        %v960 = vmul.f32 %v894, 1.442695
        %v961 = vpow.pop %v960
        %v962 = vmul.f32 %v895, 1.442695
        %v963 = vpow.pop %v962
        %v964 = vmul.f32 %v896, 1.442695
        %v965 = vpow.pop %v964
        %v966 = vmul.f32 %v897, 1.442695
        %v967 = vpow.pop %v966
        %v968 = vmul.f32 %v898, 1.442695
        %v969 = vpow.pop %v968
        %v970 = vmul.f32 %v899, 1.442695
        %v971 = vpow.pop %v970
        %v972 = vmul.f32 %v900, 1.442695
        %v973 = vpow.pop %v972
        %v974 = vmul.f32 %v901, 1.442695
        %v975 = vpow.pop %v974
        %v976 = vmul.f32 %v902, 1.442695
        %v977 = vpow.pop %v976
        %v978 = vmul.f32 %v903, 1.442695
        %v979 = vpow.pop %v978
        %v980 = vmul.f32 %v904, 1.442695
        %v981 = vpow.pop %v980
        %v982 = vmul.f32 %v905, 1.442695
        %v983 = vpow.pop %v982
        %v984 = vmul.f32 %v906, 1.442695
        %v985 = vpow.pop %v984
        %v986 = vmul.f32 %v907, 1.442695
        %v987 = vpow.pop %v986
        %v988 = vmul.f32 %v908, 1.442695
        %v989 = vpow.pop %v988
        %v990 = vmul.f32 %v909, 1.442695
        %v991 = vpow.pop %v990
        %v992 = vmul.f32 %v910, 1.442695
        %v993 = vpow.pop %v992
        %v994 = vmul.f32 %v911, 1.442695
        %v995 = vpow.pop %v994
        %v996 = vmul.f32 %v912, 1.442695
        %v997 = vpow.pop %v996
        %v998 = vmul.f32 %v913, 1.442695
        %v999 = vpow.pop %v998
        %v1000 = vmul.f32 %v914, 1.442695
        %v1001 = vpow.pop %v1000
        %v1002 = vmul.f32 %v915, 1.442695
        %v1003 = vpow.pop %v1002
        %v1004 = vmul.f32 %v916, 1.442695
        %v1005 = vpow.pop %v1004
        %v1006 = vmul.f32 %v917, 1.442695
        %v1007 = vpow.pop %v1006
        %v1008 = vmul.f32 %v918, 1.442695
        %v1009 = vpow.pop %v1008
        %v1010 = vmul.f32 %v919, 1.442695
        %v1011 = vpow.pop %v1010
        %v1012 = vmul.f32 %v920, 1.442695
        %v1013 = vpow.pop %v1012
        %v1014 = vmul.f32 %v921, 1.442695
        %v1015 = vpow.pop %v1014
        %v1016 = vmul.f32 %v922, 1.442695
        %v1017 = vpow.pop %v1016
        %v1018 = vmul.f32 %v923, 1.442695
        %v1019 = vpow.pop %v1018
        %v1020 = vmul.f32 %v924, 1.442695
        %v1021 = vpow.pop %v1020
        %v1022 = vmul.f32 %v925, 1.442695
        %v1023 = vpow.pop %v1022
        %v1024 = vmul.f32 %v926, 1.442695
        %v1025 = vpow.pop %v1024
        %v1026 = vmul.f32 %v927, 1.442695
        %v1027 = vpow.pop %v1026
        %v1028 = vmul.f32 %v928, 1.442695
        %v1029 = vpow.pop %v1028
        %v1030 = vmul.f32 %v929, 1.442695
        %v1031 = vpow.pop %v1030
        %v1032 = vmul.f32 %v930, 1.442695
        %v1033 = vpow.pop %v1032
        %v1034 = vmul.f32 %v931, 1.442695
        %v1035 = vpow.pop %v1034
        %v1036 = vmul.f32 %v932, 1.442695
        %v1037 = vpow.pop %v1036
        %v1038 = vmul.f32 %v933, 1.442695
        %v1039 = vpow.pop %v1038
        %v1040 = vmul.f32 %v934, 1.442695
        %v1041 = vpow.pop %v1040
        %v1042 = vmul.f32 %v935, 1.442695
        %v1043 = vpow.pop %v1042
        %v1044 = vmul.f32 %v936, 1.442695
        %v1045 = vpow.pop %v1044
        %v1046 = vmul.f32 %v937, 1.442695
        %v1047 = vpow.pop %v1046
        %v1048 = vmul.f32 %v938, 1.442695
        %v1049 = vpow.pop %v1048
        %v1050 = vmul.f32 %v939, 1.442695
        %v1051 = vpow.pop %v1050
        %v1052 = vmul.f32 %v940, 1.442695
        %v1053 = vpow.pop %v1052
        %v1054 = vmul.f32 %v941, 1.442695
        %v1055 = vpow.pop %v1054
        %v1056 = vmul.f32 %v942, 1.442695
        %v1057 = vpow.pop %v1056
        %v1058 = vmul.f32 %v943, 1.442695
        %v1059 = vpow.pop %v1058
        %v1060 = vmul.f32 %v944, 1.442695
        %v1061 = vpow.pop %v1060
        %v1062 = vmul.f32 %v945, 1.442695
        %v1063 = vpow.pop %v1062
        %v1064 = vmul.f32 %v946, 1.442695
        %v1065 = vpow.pop %v1064
        %v1066 = vmul.f32 %v947, 1.442695
        %v1067 = vpow.pop %v1066
        %v1068 = vmul.f32 %v948, 1.442695
        %v1069 = vpow.pop %v1068
        %v1070 = vmul.f32 %v949, 1.442695
        %v1071 = vpow.pop %v1070
        %v1072 = vmul.f32 %v950, 1.442695
        %v1073 = vpow.pop %v1072
        %v1074 = vmul.f32 %v951, 1.442695
        %v1075 = vpow.pop %v1074
        %v1076 = vmul.f32 %v952, 1.442695
        %v1077 = vpow.pop %v1076
        %v1078 = vmul.f32 %v953, 1.442695
        %v1079 = vpow.pop %v1078
        %v1080 = vmul.f32 %v954, 1.442695
        %v1081 = vpow.pop %v1080
        %v1082 = vmul.f32 %v955, 1.442695
        %v1083 = vpow.pop %v1082
        %v1084 = vadd.f32 %v957, %v961
        %v1085 = vadd.f32 %v1084, %v965
        %v1086 = vadd.f32 %v1085, %v969
        %v1087 = vadd.f32 %v1086, %v973
        %v1088 = vadd.f32 %v1087, %v977
        %v1089 = vadd.f32 %v1088, %v981
        %v1090 = vadd.f32 %v1089, %v985
        %v1091 = vadd.f32 %v1090, %v989
        %v1092 = vadd.f32 %v1091, %v993
        %v1093 = vadd.f32 %v1092, %v997
        %v1094 = vadd.f32 %v1093, %v1001
        %v1095 = vadd.f32 %v1094, %v1005
        %v1096 = vadd.f32 %v1095, %v1009
        %v1097 = vadd.f32 %v1096, %v1013
        %v1098 = vadd.f32 %v1097, %v1017
        %v1099 = vadd.f32 %v1098, %v1021
        %v1100 = vadd.f32 %v1099, %v1025
        %v1101 = vadd.f32 %v1100, %v1029
        %v1102 = vadd.f32 %v1101, %v1033
        %v1103 = vadd.f32 %v1102, %v1037
        %v1104 = vadd.f32 %v1103, %v1041
        %v1105 = vadd.f32 %v1104, %v1045
        %v1106 = vadd.f32 %v1105, %v1049
        %v1107 = vadd.f32 %v1106, %v1053
        %v1108 = vadd.f32 %v1107, %v1057
        %v1109 = vadd.f32 %v1108, %v1061
        %v1110 = vadd.f32 %v1109, %v1065
        %v1111 = vadd.f32 %v1110, %v1069
        %v1112 = vadd.f32 %v1111, %v1073
        %v1113 = vadd.f32 %v1112, %v1077
        %v1114 = vadd.f32 %v1113, %v1081
        %v1115 = vrot.slane %v1114, 4
        %v1116 = vadd.f32 %v1114, %v1115
        %v1117 = vrot.slane %v1116, 2
        %v1118 = vadd.f32 %v1116, %v1117
        %v1119 = vrot.slane %v1118, 1
        %v1120 = vadd.f32 %v1118, %v1119
        %v1121 = vadd.f32 %v959, %v963
        %v1122 = vadd.f32 %v1121, %v967
        %v1123 = vadd.f32 %v1122, %v971
        %v1124 = vadd.f32 %v1123, %v975
        %v1125 = vadd.f32 %v1124, %v979
        %v1126 = vadd.f32 %v1125, %v983
        %v1127 = vadd.f32 %v1126, %v987
        %v1128 = vadd.f32 %v1127, %v991
        %v1129 = vadd.f32 %v1128, %v995
        %v1130 = vadd.f32 %v1129, %v999
        %v1131 = vadd.f32 %v1130, %v1003
        %v1132 = vadd.f32 %v1131, %v1007
        %v1133 = vadd.f32 %v1132, %v1011
        %v1134 = vadd.f32 %v1133, %v1015
        %v1135 = vadd.f32 %v1134, %v1019
        %v1136 = vadd.f32 %v1135, %v1023
        %v1137 = vadd.f32 %v1136, %v1027
        %v1138 = vadd.f32 %v1137, %v1031
        %v1139 = vadd.f32 %v1138, %v1035
        %v1140 = vadd.f32 %v1139, %v1039
        %v1141 = vadd.f32 %v1140, %v1043
        %v1142 = vadd.f32 %v1141, %v1047
        %v1143 = vadd.f32 %v1142, %v1051
        %v1144 = vadd.f32 %v1143, %v1055
        %v1145 = vadd.f32 %v1144, %v1059
        %v1146 = vadd.f32 %v1145, %v1063
        %v1147 = vadd.f32 %v1146, %v1067
        %v1148 = vadd.f32 %v1147, %v1071
        %v1149 = vadd.f32 %v1148, %v1075
        %v1150 = vadd.f32 %v1149, %v1079
        %v1151 = vadd.f32 %v1150, %v1083
        %v1152 = vrot.slane %v1151, 4
        %v1153 = vadd.f32 %v1151, %v1152
        %v1154 = vrot.slane %v1153, 2
        %v1155 = vadd.f32 %v1153, %v1154
        %v1156 = vrot.slane %v1155, 1
        %v1157 = vadd.f32 %v1155, %v1156
        %v1158 = vpack.c.bf16 %v961, %v957
        %v1159 = vpack.c.bf16 %v963, %v959
        %v1160 = vpack.c.bf16 %v969, %v965
        %v1161 = vpack.c.bf16 %v971, %v967
        %v1162 = vpack.c.bf16 %v977, %v973
        %v1163 = vpack.c.bf16 %v979, %v975
        %v1164 = vpack.c.bf16 %v985, %v981
        %v1165 = vpack.c.bf16 %v987, %v983
        %v1166 = vpack.c.bf16 %v993, %v989
        %v1167 = vpack.c.bf16 %v995, %v991
        %v1168 = vpack.c.bf16 %v1001, %v997
        %v1169 = vpack.c.bf16 %v1003, %v999
        %v1170 = vpack.c.bf16 %v1009, %v1005
        %v1171 = vpack.c.bf16 %v1011, %v1007
        %v1172 = vpack.c.bf16 %v1017, %v1013
        %v1173 = vpack.c.bf16 %v1019, %v1015
        %v1174 = vpack.c.bf16 %v1025, %v1021
        %v1175 = vpack.c.bf16 %v1027, %v1023
        %v1176 = vpack.c.bf16 %v1033, %v1029
        %v1177 = vpack.c.bf16 %v1035, %v1031
        %v1178 = vpack.c.bf16 %v1041, %v1037
        %v1179 = vpack.c.bf16 %v1043, %v1039
        %v1180 = vpack.c.bf16 %v1049, %v1045
        %v1181 = vpack.c.bf16 %v1051, %v1047
        %v1182 = vpack.c.bf16 %v1057, %v1053
        %v1183 = vpack.c.bf16 %v1059, %v1055
        %v1184 = vpack.c.bf16 %v1065, %v1061
        %v1185 = vpack.c.bf16 %v1067, %v1063
        %v1186 = vpack.c.bf16 %v1073, %v1069
        %v1187 = vpack.c.bf16 %v1075, %v1071
        %v1188 = vpack.c.bf16 %v1081, %v1077
        %v1189 = vpack.c.bf16 %v1083, %v1079
        %v1194 = vunpack.c.l.b16 %v528
        %v1195 = vunpack.c.h.b16 %v528
        %v1196 = vunpack.c.l.b16 %v529
        %v1197 = vunpack.c.h.b16 %v529
        %v1198 = vunpack.c.l.b16 %v530
        %v1199 = vunpack.c.h.b16 %v530
        %v1200 = vunpack.c.l.b16 %v531
        %v1201 = vunpack.c.h.b16 %v531
        %v1202 = vpack.c.b16 %v1196, %v1194
        %v1203 = vpack.c.b16 %v1197, %v1195
        %v1204 = vpack.c.b16 %v1200, %v1198
        %v1205 = vpack.c.b16 %v1201, %v1199
        %1210 = vmatprep.subr.bf16.mxu0 %v1173
        %1211 = vmatpush1.bf16.msra.mxu0 %v1172
        %1212 = vmatprep.subr.bf16.mxu0 %v1171
        %1213 = vmatpush1.bf16.msra.mxu0 %v1170
        %1214 = vmatprep.subr.bf16.mxu0 %v1169
        %1215 = vmatpush1.bf16.msra.mxu0 %v1168
        %1216 = vmatprep.subr.bf16.mxu0 %v1167
        %1217 = vmatpush1.bf16.msra.mxu0 %v1166
        %1218 = vmatprep.subr.bf16.mxu0 %v1165
        %1219 = vmatpush1.bf16.msra.mxu0 %v1164
        %1220 = vmatprep.subr.bf16.mxu0 %v1163
        %1221 = vmatpush1.bf16.msra.mxu0 %v1162
        %1222 = vmatprep.subr.bf16.mxu0 %v1161
        %1223 = vmatpush1.bf16.msra.mxu0 %v1160
        %1224 = vmatprep.subr.bf16.mxu0 %v1159
        %1225 = vmatpush1.bf16.msra.mxu0 %v1158
        %1226 = vmatprep.subr.bf16.mxu0 %v1189
        %1227 = vmatpush2.bf16.msra.mxu0 %v1188
        %1228 = vmatprep.subr.bf16.mxu0 %v1187
        %1229 = vmatpush2.bf16.msra.mxu0 %v1186
        %1230 = vmatprep.subr.bf16.mxu0 %v1185
        %1231 = vmatpush2.bf16.msra.mxu0 %v1184
        %1232 = vmatprep.subr.bf16.mxu0 %v1183
        %1233 = vmatpush2.bf16.msra.mxu0 %v1182
        %1234 = vmatprep.subr.bf16.mxu0 %v1181
        %1235 = vmatpush2.bf16.msra.mxu0 %v1180
        %1236 = vmatprep.subr.bf16.mxu0 %v1179
        %1237 = vmatpush2.bf16.msra.mxu0 %v1178
        %1238 = vmatprep.subr.bf16.mxu0 %v1177
        %1239 = vmatpush2.bf16.msra.mxu0 %v1176
        %1240 = vmatprep.subr.bf16.mxu0 %v1175
        %1241 = vmatpush2.bf16.msra.mxu0 %v1174
        %1242 = vmatprep.mubr.bf16.mxu0 %v1203
        %1243 = vmatmul.mubr.bf16.gmra.mxu0 %v1202
        %v1244 = vpop.f32.mrf.mxu0
        %v1245 = vadd.f32 0.0, %v1244
        %v1246 = vpop.f32.mrf.mxu0
        %v1247 = vadd.f32 0.0, %v1246
        %v1248 = vpop.f32.mrf.mxu0
        %v1249 = vadd.f32 0.0, %v1248
        %v1250 = vpop.f32.mrf.mxu0
        %v1251 = vadd.f32 0.0, %v1250
        %1252 = vmatprep.mubr.bf16.mxu0 %v1205
        %1253 = vmatmul.mubr.bf16.gmra.mxu0 %v1204
        %v1254 = vpop.f32.mrf.mxu0
        %v1255 = vadd.f32 0.0, %v1254
        %v1256 = vpop.f32.mrf.mxu0
        %v1257 = vadd.f32 0.0, %v1256
        %v1258 = vpop.f32.mrf.mxu0
        %v1259 = vadd.f32 0.0, %v1258
        %v1260 = vpop.f32.mrf.mxu0
        %v1261 = vadd.f32 0.0, %v1260
        %1262 = vdwg.mxu0
        %v1263 = vrcp.pop %v1120
        %v1264 = vrcp.pop %v1157
        %s1265 = sld [smem:[#allocation3]]
        %v1266 = vld [vmem:[%s245] sm:$0xff]
        %v1267 = vld [vmem:[%s245 + $0x8] sm:$0xff]
        %v1268 = vld [vmem:[%s245 + $0x10] sm:$0xff]
        %v1269 = vld [vmem:[%s245 + $0x18] sm:$0xff]
        %v1270 = vld [vmem:[%s245 + $0x20] sm:$0xff]
        %v1271 = vld [vmem:[%s245 + $0x28] sm:$0xff]
        %v1272 = vld [vmem:[%s245 + $0x30] sm:$0xff]
        %v1273 = vld [vmem:[%s245 + $0x38] sm:$0xff]
        %v1274 = vmul.f32 %v1245, %v1263
        %v1275 = vmul.f32 %v1247, %v1264
        %v1276 = vmul.f32 %v1249, %v1263
        %v1277 = vmul.f32 %v1251, %v1264
        %v1278 = vmul.f32 %v1255, %v1263
        %v1279 = vmul.f32 %v1257, %v1264
        %v1280 = vmul.f32 %v1259, %v1263
        %v1281 = vmul.f32 %v1261, %v1264
        %v1282 = vstv %s1265
        %v1283 = vmul.f32 %v1282, %v1274
        %v1284 = vmul.f32 %v1282, %v1275
        %v1285 = vmul.f32 %v1282, %v1276
        %v1286 = vmul.f32 %v1282, %v1277
        %v1287 = vmul.f32 %v1282, %v1278
        %v1288 = vmul.f32 %v1282, %v1279
        %v1289 = vmul.f32 %v1282, %v1280
        %v1290 = vmul.f32 %v1282, %v1281
        %v1291 = vadd.f32 %v1283, %v1266
        %v1292 = vadd.f32 %v1284, %v1267
        %v1293 = vadd.f32 %v1285, %v1268
        %v1294 = vadd.f32 %v1286, %v1269
        %v1295 = vadd.f32 %v1287, %v1270
        %v1296 = vadd.f32 %v1288, %v1271
        %v1297 = vadd.f32 %v1289, %v1272
        %v1298 = vadd.f32 %v1290, %v1273
        %1299 = vst [vmem:[%s231] sm:$0xff] %v1291
        %1300 = vst [vmem:[%s231 + $0x8] sm:$0xff] %v1292
        %1301 = vst [vmem:[%s231 + $0x10] sm:$0xff] %v1293
        %1302 = vst [vmem:[%s231 + $0x18] sm:$0xff] %v1294
        %1303 = vst [vmem:[%s231 + $0x20] sm:$0xff] %v1295
        %1304 = vst [vmem:[%s231 + $0x28] sm:$0xff] %v1296
        %1305 = vst [vmem:[%s231 + $0x30] sm:$0xff] %v1297
        %1306 = vst [vmem:[%s231 + $0x38] sm:$0xff] %v1298
        %s1307 = sand.u32 %s137, 1
        %s1308 = scalar_lea.sflag [#allocation5], %s1307
        %s1309 = sand.u32 %s137, 1
        %s1310 = smul.addr %s1309, 64
        %s1311 = scalar_lea.vmem [#allocation4], %s1310
        // Predicated region
        $region41: #{tpu_custom_call.1} parent=35 // pred_check
          %p1312 = pneg %p147
        $region42: #{tpu_custom_call.1} parent=35 // pred_check_branch
          %1314 = sbr.rel (%p1312) target = $region44
        $region43: #{tpu_custom_call.1} parent=35 // pred_region
          %s1315 = smul.u32 2, %s24
          %s1317 = ssub.s32 1024, 1024
          %1318 = vsyncadd %s1308, %s1317
          %s1319 = smul.addr %s23, 8
          %s1320 = sadd.s32 %s1315, %s1319
          %s1321 = smul.addr %s1320, 128
          %s1322 = scalar_lea.hbm %s4, %s1321
          %s1323 = sshll.u32 %s1311, 4
          %s1324 = int_to_ptr.vmem [resolvable:$true] %s1323
          %1329 = dma.vmem_to_hbm [thread:$0]  %s1324, 1024, %s1322, %s1308, 256, 256, 16
        $region44: #{tpu_custom_call.1} parent=35 // pred_fallthru
          _
      $region36: #{tpu_custom_call.1} parent=5 // pred_fallthru
        _
      %p1330 = scmp.le.s32.totalorder 2, %s14
      // Predicated region
      $region45: #{tpu_custom_call.1} parent=5 // pred_check
        %p1331 = pneg %p1330
      $region46: #{tpu_custom_call.1} parent=5 // pred_check_branch
        %1333 = sbr.rel (%p1331) target = $region48
      $region47: #{tpu_custom_call.1} parent=5 // pred_region
        %s1334 = ssub.s32 %s14, 2
        // Predicated region
        $region49: #{tpu_custom_call.1} parent=47 // pred_check
          %p1335 = pneg %p153
        $region50: #{tpu_custom_call.1} parent=47 // pred_check_branch
          %1337 = sbr.rel (%p1335) target = $region52
        $region51: #{tpu_custom_call.1} parent=47 // pred_region
          %s1338 = sand.u32 %s138, 1
          %s1339 = scalar_lea.sflag [#allocation5], %s1338
          %s1340 = sand.u32 %s138, 1
          %s1341 = smul.addr %s1340, 64
          %s1342 = scalar_lea.vmem [#allocation4], %s1341
          %1343 = dma.done %s1339, 1024
        $region52: #{tpu_custom_call.1} parent=47 // pred_fallthru
          _
      $region48: #{tpu_custom_call.1} parent=5 // pred_fallthru
        _
    $region6: #{tpu_custom_call.1} parent=1 // loop_footer
      %s18 = sadd.s32 1, %s14
    $region7: #{tpu_custom_call.1} parent=1 // loop_footer_branch
      %13 = sbr.rel target = $region3
    $region8: #{tpu_custom_call.1} parent=1 // loop_exit
      _
    %1344 = vsyncpa [#allocation5], 1
    %s1345 = scalar_lea.sflag [#allocation5], 1
    %1346 = vsyncpa %s1345, 1

</llo_original>
